<compile_context>
chip_gen: v5e
topology: v5e:2x2
jax: 0.10.0
libtpu: 0.0.40
codegen_flags: <defaults>
</compile_context>

<pallas_src>
from functools import partial

import jax
import jax.numpy as jnp
from jax.experimental import pallas as pl
from jax.experimental.pallas import tpu as pltpu

HIDDEN_SIZE = 64


def _round_up(x, m):
    return ((x + m - 1) // m) * m


def critic_kernel(s_ref, a_ref, w1s_ref, w1a_ref, b1_ref, w2_ref, b2_ref,
                  w3_ref, b3_ref, o_ref, *, compute_dtype):
    cd = compute_dtype

    # Layer 1: fused concat == split matmul.  Inputs arrive f32 from HBM and
    # are cast to bf16 on the VPU here (cheap, hidden under DMA); MXU
    # accumulates in f32.
    h1 = jnp.dot(s_ref[...].astype(cd), w1s_ref[...].astype(cd),
                 preferred_element_type=jnp.float32)
    h1 = h1 + jnp.dot(a_ref[...].astype(cd), w1a_ref[...].astype(cd),
                      preferred_element_type=jnp.float32)
    h1 = jnp.maximum(h1 + b1_ref[...], 0.0)

    # Layer 2: Linear(H -> H) + ReLU.
    h2 = jnp.dot(h1.astype(cd), w2_ref[...].astype(cd),
                 preferred_element_type=jnp.float32)
    h2 = jnp.maximum(h2 + b2_ref[...], 0.0)

    # Layer 3: Linear(H -> 1) + Tanh as a VPU multiply + XLU lane reduction
    # (avoids an MXU tile that would be 127/128 wasted columns).
    q = jnp.sum(h2 * w3_ref[...], axis=-1, keepdims=True)
    o_ref[...] = jnp.tanh(q + b3_ref[...]).astype(o_ref.dtype)


def _critic_pallas(state, action, params, *, block_b, compute_dtype):
    w1, b1, w2, b2, w3, b3 = params
    B, S = state.shape
    A = action.shape[1]
    H = w1.shape[1]

    # Batch tile: multiple of 16 sublanes (bf16 packing), capped by block_b.
    tb = min(_round_up(block_b, 16), _round_up(B, 16))
    # v7x megacore: ensure >= 2 grid steps so both TensorCores get work.
    if pl.cdiv(B, tb) < 2 and B > 16:
        tb = max(16, _round_up(-(-B // 2), 16))
    grid = (pl.cdiv(B, tb),)

    # Split W1 so torch.cat fuses into the kernel (two matmuls on the
    # un-concatenated inputs).  Biases as (1, H) rows; W3 as a (1, H) row for
    # the VPU reduction.  These are tiny, VMEM-resident tensors.
    w1s = w1[:S]
    w1a = w1[S:]
    b1r = b1.reshape(1, H).astype(jnp.float32)
    b2r = b2.reshape(1, H).astype(jnp.float32)
    w3r = w3.reshape(1, H).astype(jnp.float32)
    b3r = b3.reshape(1, 1).astype(jnp.float32)

    def act_spec(feat):
        # Batch-tiled activation blocks (Pallas double-buffers these).
        return pl.BlockSpec((tb, feat), lambda i: (i, 0))

    def resident_spec(shape):
        # Constant block index -> weights stay VMEM-resident across grid steps.
        return pl.BlockSpec(shape, lambda i: (0,) * len(shape))

    return pl.pallas_call(
        partial(critic_kernel, compute_dtype=compute_dtype),
        out_shape=jax.ShapeDtypeStruct((B, 1), jnp.float32),
        grid=grid,
        in_specs=[
            act_spec(S),
            act_spec(A),
            resident_spec((S, H)),
            resident_spec((A, H)),
            resident_spec((1, H)),
            resident_spec((H, H)),
            resident_spec((1, H)),
            resident_spec((1, H)),
            resident_spec((1, 1)),
        ],
        out_specs=pl.BlockSpec((tb, 1), lambda i: (i, 0)),
        compiler_params=pltpu.CompilerParams(
            dimension_semantics=("parallel",),
            vmem_limit_bytes=48 * 1024 * 1024,
        ),
    )(state, action, w1s, w1a, b1r, w2, b2r, w3r, b3r)


def critic_forward(state, action, params, *, block_b=8192,
                   compute_dtype=jnp.bfloat16, min_pallas_batch=2048):
    """Concat + 3-layer MLP (ReLU/ReLU/Tanh); Pallas kernel for large batches."""
    if state.shape[0] < min_pallas_batch:
        # Small-batch fast path: fixed pallas_call/grid overhead can't be
        # amortized; plain fused XLA matches or beats any custom kernel here.
        return critic_reference(state, action, params, compute_dtype)
    return _critic_pallas(state, action, params, block_b=block_b,
                          compute_dtype=compute_dtype)


def critic_reference(state, action, params, compute_dtype=jnp.bfloat16):
    """Pure-JAX reference mirroring the kernel's bf16-compute / f32-accum math."""
    w1, b1, w2, b2, w3, b3 = params
    cd = compute_dtype
    x = jnp.concatenate([state, action], axis=1).astype(cd)
    h = jnp.dot(x, w1.astype(cd), preferred_element_type=jnp.float32) + b1
    h = jnp.maximum(h, 0.0)
    h = jnp.dot(h.astype(cd), w2.astype(cd),
                preferred_element_type=jnp.float32) + b2
    h = jnp.maximum(h, 0.0)
    q = jnp.sum(h * w3.reshape(1, -1), axis=-1, keepdims=True) + b3
    return jnp.tanh(q)


def init_critic_params(key, state_size, action_size, hidden=HIDDEN_SIZE):
    """Deterministic init mimicking PyTorch nn.Linear default U[-1/sqrt(fan_in), 1/sqrt(fan_in)]."""
    ks = jax.random.split(key, 6)
    in1 = state_size + action_size

    def uni(k, shape, fan_in):
        bound = 1.0 / jnp.sqrt(fan_in)
        return jax.random.uniform(k, shape, jnp.float32, -bound, bound)

    w1 = uni(ks[0], (in1, hidden), in1)
    b1 = uni(ks[1], (1, hidden), in1)
    w2 = uni(ks[2], (hidden, hidden), hidden)
    b2 = uni(ks[3], (1, hidden), hidden)
    w3 = uni(ks[4], (hidden, 1), hidden)
    b3 = uni(ks[5], (1, 1), hidden)
    return (w1, b1, w2, b2, w3, b3)


if __name__ == "__main__":
    key = jax.random.PRNGKey(0)
    k_param, k_state, k_action = jax.random.split(key, 3)

    batch = 200          # not a tile multiple -> exercises the ragged last block
    state_size = 16
    action_size = 4

    params = init_critic_params(k_param, state_size, action_size)
    state = jax.random.normal(k_state, (batch, state_size), jnp.float32)
    action = jax.random.normal(k_action, (batch, action_size), jnp.float32)

    # Force the Pallas path (the small-batch dispatch would otherwise pick the
    # XLA fast path); block_b=128 gives a 2-step grid with a partial last block.
    q = critic_forward(state, action, params, block_b=128, min_pallas_batch=0)
    q = jax.block_until_ready(q)

    q_ref = critic_reference(state, action, params)
    assert q.shape == (batch, 1)
    err = float(jnp.max(jnp.abs(q - q_ref)))
    assert jnp.allclose(q, q_ref, atol=1e-3, rtol=1e-3), f"max abs err = {err}"

    print("KERNEL_OK")
</pallas_src>

<mosaic_0001>
module attributes {stable_mosaic.version = 11 : i64} {
  func.func @critic_kernel(%arg0: i32, %arg1: memref<128x16xf32, #tpu.memory_space<vmem>>, %arg2: memref<128x4xf32, #tpu.memory_space<vmem>>, %arg3: memref<16x64xf32, #tpu.memory_space<vmem>>, %arg4: memref<4x64xf32, #tpu.memory_space<vmem>>, %arg5: memref<1x64xf32, #tpu.memory_space<vmem>>, %arg6: memref<64x64xf32, #tpu.memory_space<vmem>>, %arg7: memref<1x64xf32, #tpu.memory_space<vmem>>, %arg8: memref<1x64xf32, #tpu.memory_space<vmem>>, %arg9: memref<1x1xf32, #tpu.memory_space<vmem>>, %arg10: memref<128x1xf32, #tpu.memory_space<vmem>>) attributes {dimension_semantics = [#tpu.dimension_semantics<parallel>], iteration_bounds = array<i64: 2>, scalar_prefetch = 0 : i64, scratch_operands = 0 : i64, tpu.core_type = #tpu.core_type<tc>, window_params = [{transform_indices = @transform_0, window_bounds = array<i64: 128, 16>}, {transform_indices = @transform_1, window_bounds = array<i64: 128, 4>}, {pipeline_mode = #tpu.pipeline_mode<synchronous>, transform_indices = @transform_2, window_bounds = array<i64: 16, 64>}, {pipeline_mode = #tpu.pipeline_mode<synchronous>, transform_indices = @transform_3, window_bounds = array<i64: 4, 64>}, {pipeline_mode = #tpu.pipeline_mode<synchronous>, transform_indices = @transform_4, window_bounds = array<i64: 1, 64>}, {pipeline_mode = #tpu.pipeline_mode<synchronous>, transform_indices = @transform_5, window_bounds = array<i64: 64, 64>}, {pipeline_mode = #tpu.pipeline_mode<synchronous>, transform_indices = @transform_6, window_bounds = array<i64: 1, 64>}, {pipeline_mode = #tpu.pipeline_mode<synchronous>, transform_indices = @transform_7, window_bounds = array<i64: 1, 64>}, {pipeline_mode = #tpu.pipeline_mode<synchronous>, transform_indices = @transform_8, window_bounds = array<i64: 1, 1>}, {transform_indices = @transform_9, window_bounds = array<i64: 128, 1>}]} {
    %c0 = arith.constant 0 : index
    %c0_0 = arith.constant 0 : index
    %0 = vector.load %arg1[%c0, %c0_0] : memref<128x16xf32, #tpu.memory_space<vmem>>, vector<128x16xf32>
    %1 = arith.truncf %0 : vector<128x16xf32> to vector<128x16xbf16>
    %c0_1 = arith.constant 0 : index
    %c0_2 = arith.constant 0 : index
    %2 = vector.load %arg3[%c0_1, %c0_2] : memref<16x64xf32, #tpu.memory_space<vmem>>, vector<16x64xf32>
    %3 = arith.truncf %2 : vector<16x64xf32> to vector<16x64xbf16>
    %cst = arith.constant dense<0.000000e+00> : vector<128x64xf32>
    %4 = tpu.matmul %1, %3, %cst {dimension_numbers = #tpu.dot_dimension_numbers<[1], [0], [0], [1], [0, 0, 1, 1], [], []>} : vector<128x16xbf16>, vector<16x64xbf16>, vector<128x64xf32> -> vector<128x64xf32>
    %c0_3 = arith.constant 0 : index
    %c0_4 = arith.constant 0 : index
    %5 = vector.load %arg2[%c0_3, %c0_4] : memref<128x4xf32, #tpu.memory_space<vmem>>, vector<128x4xf32>
    %6 = arith.truncf %5 : vector<128x4xf32> to vector<128x4xbf16>
    %c0_5 = arith.constant 0 : index
    %c0_6 = arith.constant 0 : index
    %7 = vector.load %arg4[%c0_5, %c0_6] : memref<4x64xf32, #tpu.memory_space<vmem>>, vector<4x64xf32>
    %8 = arith.truncf %7 : vector<4x64xf32> to vector<4x64xbf16>
    %cst_7 = arith.constant dense<0.000000e+00> : vector<128x64xf32>
    %9 = tpu.matmul %6, %8, %cst_7 {dimension_numbers = #tpu.dot_dimension_numbers<[1], [0], [0], [1], [0, 0, 1, 1], [], []>} : vector<128x4xbf16>, vector<4x64xbf16>, vector<128x64xf32> -> vector<128x64xf32>
    %10 = arith.addf %4, %9 : vector<128x64xf32>
    %c0_8 = arith.constant 0 : index
    %c0_9 = arith.constant 0 : index
    %11 = vector.load %arg5[%c0_8, %c0_9] : memref<1x64xf32, #tpu.memory_space<vmem>>, vector<1x64xf32>
    %12 = vector.broadcast %11 : vector<1x64xf32> to vector<128x64xf32>
    %13 = arith.addf %10, %12 : vector<128x64xf32>
    %cst_10 = arith.constant 0.000000e+00 : f32
    %14 = vector.broadcast %cst_10 : f32 to vector<128x64xf32>
    %15 = arith.maximumf %13, %14 : vector<128x64xf32>
    %16 = arith.truncf %15 : vector<128x64xf32> to vector<128x64xbf16>
    %c0_11 = arith.constant 0 : index
    %c0_12 = arith.constant 0 : index
    %17 = vector.load %arg6[%c0_11, %c0_12] : memref<64x64xf32, #tpu.memory_space<vmem>>, vector<64x64xf32>
    %18 = arith.truncf %17 : vector<64x64xf32> to vector<64x64xbf16>
    %cst_13 = arith.constant dense<0.000000e+00> : vector<128x64xf32>
    %19 = tpu.matmul %16, %18, %cst_13 {dimension_numbers = #tpu.dot_dimension_numbers<[1], [0], [0], [1], [0, 0, 1, 1], [], []>} : vector<128x64xbf16>, vector<64x64xbf16>, vector<128x64xf32> -> vector<128x64xf32>
    %c0_14 = arith.constant 0 : index
    %c0_15 = arith.constant 0 : index
    %20 = vector.load %arg7[%c0_14, %c0_15] : memref<1x64xf32, #tpu.memory_space<vmem>>, vector<1x64xf32>
    %21 = vector.broadcast %20 : vector<1x64xf32> to vector<128x64xf32>
    %22 = arith.addf %19, %21 : vector<128x64xf32>
    %cst_16 = arith.constant 0.000000e+00 : f32
    %23 = vector.broadcast %cst_16 : f32 to vector<128x64xf32>
    %24 = arith.maximumf %22, %23 : vector<128x64xf32>
    %c0_17 = arith.constant 0 : index
    %c0_18 = arith.constant 0 : index
    %25 = vector.load %arg8[%c0_17, %c0_18] : memref<1x64xf32, #tpu.memory_space<vmem>>, vector<1x64xf32>
    %26 = vector.broadcast %25 : vector<1x64xf32> to vector<128x64xf32>
    %27 = arith.mulf %24, %26 : vector<128x64xf32>
    %cst_19 = arith.constant dense<0.000000e+00> : vector<128xf32>
    %28 = vector.multi_reduction <add>, %27, %cst_19 [1] : vector<128x64xf32> to vector<128xf32>
    %29 = vector.shape_cast %28 : vector<128xf32> to vector<128x1xf32>
    %c0_20 = arith.constant 0 : index
    %c0_21 = arith.constant 0 : index
    %30 = vector.load %arg9[%c0_20, %c0_21] : memref<1x1xf32, #tpu.memory_space<vmem>>, vector<1x1xf32>
    %31 = vector.broadcast %30 : vector<1x1xf32> to vector<128x1xf32>
    %32 = arith.addf %29, %31 : vector<128x1xf32>
    %33 = math.tanh %32 : vector<128x1xf32>
    %c0_22 = arith.constant 0 : index
    %c0_23 = arith.constant 0 : index
    %34 = vector.load %arg10[%c0_22, %c0_23] : memref<128x1xf32, #tpu.memory_space<vmem>>, vector<128x1xf32>
    tpu.vector_store %arg10[%c0_22, %c0_23], %33 {strides = array<i32>} : memref<128x1xf32, #tpu.memory_space<vmem>>, vector<128x1xf32>,
    return
  }
  func.func @transform_0(%arg0: i32) -> (i32, i32) {
    %c0_i32 = arith.constant 0 : i32
    %c0_i32_0 = arith.constant 0 : i32
    return %arg0, %c0_i32 : i32, i32
  }
  func.func @transform_1(%arg0: i32) -> (i32, i32) {
    %c0_i32 = arith.constant 0 : i32
    %c0_i32_0 = arith.constant 0 : i32
    return %arg0, %c0_i32 : i32, i32
  }
  func.func @transform_2(%arg0: i32) -> (i32, i32) {
    %c0_i32 = arith.constant 0 : i32
    %c0_i32_0 = arith.constant 0 : i32
    %c0_i32_1 = arith.constant 0 : i32
    return %c0_i32, %c0_i32_0 : i32, i32
  }
  func.func @transform_3(%arg0: i32) -> (i32, i32) {
    %c0_i32 = arith.constant 0 : i32
    %c0_i32_0 = arith.constant 0 : i32
    %c0_i32_1 = arith.constant 0 : i32
    return %c0_i32, %c0_i32_0 : i32, i32
  }
  func.func @transform_4(%arg0: i32) -> (i32, i32) {
    %c0_i32 = arith.constant 0 : i32
    %c0_i32_0 = arith.constant 0 : i32
    %c0_i32_1 = arith.constant 0 : i32
    return %c0_i32, %c0_i32_0 : i32, i32
  }
  func.func @transform_5(%arg0: i32) -> (i32, i32) {
    %c0_i32 = arith.constant 0 : i32
    %c0_i32_0 = arith.constant 0 : i32
    %c0_i32_1 = arith.constant 0 : i32
    return %c0_i32, %c0_i32_0 : i32, i32
  }
  func.func @transform_6(%arg0: i32) -> (i32, i32) {
    %c0_i32 = arith.constant 0 : i32
    %c0_i32_0 = arith.constant 0 : i32
    %c0_i32_1 = arith.constant 0 : i32
    return %c0_i32, %c0_i32_0 : i32, i32
  }
  func.func @transform_7(%arg0: i32) -> (i32, i32) {
    %c0_i32 = arith.constant 0 : i32
    %c0_i32_0 = arith.constant 0 : i32
    %c0_i32_1 = arith.constant 0 : i32
    return %c0_i32, %c0_i32_0 : i32, i32
  }
  func.func @transform_8(%arg0: i32) -> (i32, i32) {
    %c0_i32 = arith.constant 0 : i32
    %c0_i32_0 = arith.constant 0 : i32
    %c0_i32_1 = arith.constant 0 : i32
    return %c0_i32, %c0_i32_0 : i32, i32
  }
  func.func @transform_9(%arg0: i32) -> (i32, i32) {
    %c0_i32 = arith.constant 0 : i32
    %c0_i32_0 = arith.constant 0 : i32
    return %arg0, %c0_i32 : i32, i32
  }
}

</mosaic_0001>

<llo_original>
// kernel: tpu_custom_call.1
$region0: #{tpu_custom_call.1}
  #allocation0 [shape = 'u32[]', space=smem, size = 0x4, offset = 0x4, fixed_abs, tag = 'smem constant byte address 0x4 - core index']
  #allocation1 [shape = 'u32[72,128]{1,0:T(1,128)}', space=vmem, size = 0x9000, scoped, tag = 'internal scratch']
  #allocation2 [shape = 'f32[1,1]{1,0:T(1,128)S(1)}', space=vmem, size = 0x200, scoped, tag = 'scoped memory for tpu_custom_call.1']
  %s0 = inlined_call_operand.vmem [shape: f32[200,16], index: 0, kind: input, shape index: {}]
  %s1 = inlined_call_operand.vmem [shape: f32[200,4], index: 1, kind: input, shape index: {}]
  %s2 = inlined_call_operand.vmem [shape: f32[16,64], index: 2, kind: input, shape index: {}]
  %s3 = inlined_call_operand.vmem [shape: f32[4,64], index: 3, kind: input, shape index: {}]
  %s4 = inlined_call_operand.vmem [shape: f32[1,64], index: 4, kind: input, shape index: {}]
  %s5 = inlined_call_operand.vmem [shape: f32[64,64], index: 5, kind: input, shape index: {}]
  %s6 = inlined_call_operand.vmem [shape: f32[1,64], index: 6, kind: input, shape index: {}]
  %s7 = inlined_call_operand.vmem [shape: f32[1,64], index: 7, kind: input, shape index: {}]
  %s8 = inlined_call_operand.<no memory space> [shape: f32[1,1], index: 8, kind: input, shape index: {}]
  %s9 = inlined_call_operand.vmem [shape: f32[200,1], index: 9, kind: output, shape index: {}]
  %s10 = sld [smem:[#allocation0]]
  $region117: #{tpu_custom_call.1} parent=0
    _
  %s12 = ssub.s32 1, %s10
  %s13 = scalar_select 0, %s12, %s10
  %v14 = vstv %s8
  %15 = vst [vmem:[#allocation2] sm:$0x1] %v14
  $region1: #{tpu_custom_call.1} parent=0
    #allocation3 [shape = 'u8[131072]{0}', space=vmem, size = 0x20000, scoped, tag = 'output window, operand 0']
    loop: start=0, step=1, limit=4
    $region2: #{tpu_custom_call.1} parent=1 // loop_pre_header
      _
    $region3: #{tpu_custom_call.1} parent=1 // loop_header
      %s17 = sphi 0, %s21
      %p18 = scmp.ge.s32.totalorder %s17, 4
      %s27 = sphi 0, %s29
      %s30 = sphi 0, %s27
      %s31 = sphi 0, %s30
      %s47 = sphi 0, %s31
      %s53 = sphi 0, %s55
      %s56 = sphi 0, %s53
      %s57 = sphi 0, %s56
      %s73 = sphi 0, %s57
      %s77 = sphi 0, %s77
      %s79 = sphi 0, %s77
      %s80 = sphi 0, %s79
      %s94 = sphi 0, %s80
      %s98 = sphi 0, %s98
      %s100 = sphi 0, %s98
      %s101 = sphi 0, %s100
      %s115 = sphi 0, %s101
      %s119 = sphi 0, %s119
      %s121 = sphi 0, %s119
      %s122 = sphi 0, %s121
      %s136 = sphi 0, %s122
      %s140 = sphi 0, %s140
      %s142 = sphi 0, %s140
      %s143 = sphi 0, %s142
      %s157 = sphi 0, %s143
      %s161 = sphi 0, %s161
      %s163 = sphi 0, %s161
      %s164 = sphi 0, %s163
      %s178 = sphi 0, %s164
      %s182 = sphi 0, %s182
      %s184 = sphi 0, %s182
      %s185 = sphi 0, %s184
      %s199 = sphi 0, %s185
      %s203 = sphi 0, %s203
      %s205 = sphi 0, %s203
      %s206 = sphi 0, %s205
      %s220 = sphi 0, %s206
      %s226 = sphi 0, %s228
      %s229 = sphi 0, %s226
      %s230 = sphi 0, %s229
      %s246 = sphi 0, %s230
    $region4: #{tpu_custom_call.1} parent=1 // loop_header_branch
      %20 = sbr.rel (%p18) target = $region8
    $region5: #{tpu_custom_call.1} parent=1 // loop_body
      %s22 = ssub.s32 %s17, 1
      %s23 = ssub.s32 %s17, 2
      %s24 = sadd.s32 %s17, 1
      %s25 = ssub.s32 %s17, %s24
      %p26 = scmp.eq.s32.totalorder %s25, 0
      %s28 = sadd.s32 %s27, 1
      %s29 = scalar_select %p26, %s27, %s28
      %p32 = pneg %p26
      %p33 = scmp.eq.s32.totalorder %s17, 1
      %p34 = por %p32, %p33
      %p35 = scmp.ne.s32.totalorder %s27, %s30
      %p36 = scmp.eq.s32.totalorder %s17, 0
      %p37 = por %p35, %p36
      %p38 = scmp.ne.s32.totalorder %s27, %s30
      %p39 = scmp.eq.s32.totalorder %s22, 1
      %p40 = por %p38, %p39
      %p41 = scmp.ne.s32.totalorder %s30, %s31
      %p42 = scmp.eq.s32.totalorder %s22, 0
      %p43 = por %p41, %p42
      %p44 = scmp.ne.s32.totalorder %s30, %s31
      %p45 = scmp.eq.s32.totalorder %s23, 1
      %p46 = por %p44, %p45
      %p48 = scmp.ne.s32.totalorder %s31, %s47
      %p49 = scmp.eq.s32.totalorder %s23, 0
      %p50 = por %p48, %p49
      %s51 = ssub.s32 %s17, %s24
      %p52 = scmp.eq.s32.totalorder %s51, 0
      %s54 = sadd.s32 %s53, 1
      %s55 = scalar_select %p52, %s53, %s54
      %p58 = pneg %p52
      %p59 = scmp.eq.s32.totalorder %s17, 1
      %p60 = por %p58, %p59
      %p61 = scmp.ne.s32.totalorder %s53, %s56
      %p62 = scmp.eq.s32.totalorder %s17, 0
      %p63 = por %p61, %p62
      %p64 = scmp.ne.s32.totalorder %s53, %s56
      %p65 = scmp.eq.s32.totalorder %s22, 1
      %p66 = por %p64, %p65
      %p67 = scmp.ne.s32.totalorder %s56, %s57
      %p68 = scmp.eq.s32.totalorder %s22, 0
      %p69 = por %p67, %p68
      %p70 = scmp.ne.s32.totalorder %s56, %s57
      %p71 = scmp.eq.s32.totalorder %s23, 1
      %p72 = por %p70, %p71
      %p74 = scmp.ne.s32.totalorder %s57, %s73
      %p75 = scmp.eq.s32.totalorder %s23, 0
      %p76 = por %p74, %p75
      %s78 = sadd.s32 %s77, 1
      %p81 = scmp.eq.s32.totalorder %s17, 1
      %p82 = scmp.ne.s32.totalorder %s77, %s79
      %p83 = scmp.eq.s32.totalorder %s17, 0
      %p84 = por %p82, %p83
      %p85 = scmp.ne.s32.totalorder %s77, %s79
      %p86 = scmp.eq.s32.totalorder %s22, 1
      %p87 = por %p85, %p86
      %p88 = scmp.ne.s32.totalorder %s79, %s80
      %p89 = scmp.eq.s32.totalorder %s22, 0
      %p90 = por %p88, %p89
      %p91 = scmp.ne.s32.totalorder %s79, %s80
      %p92 = scmp.eq.s32.totalorder %s23, 1
      %p93 = por %p91, %p92
      %p95 = scmp.ne.s32.totalorder %s80, %s94
      %p96 = scmp.eq.s32.totalorder %s23, 0
      %p97 = por %p95, %p96
      %s99 = sadd.s32 %s98, 1
      %p102 = scmp.eq.s32.totalorder %s17, 1
      %p103 = scmp.ne.s32.totalorder %s98, %s100
      %p104 = scmp.eq.s32.totalorder %s17, 0
      %p105 = por %p103, %p104
      %p106 = scmp.ne.s32.totalorder %s98, %s100
      %p107 = scmp.eq.s32.totalorder %s22, 1
      %p108 = por %p106, %p107
      %p109 = scmp.ne.s32.totalorder %s100, %s101
      %p110 = scmp.eq.s32.totalorder %s22, 0
      %p111 = por %p109, %p110
      %p112 = scmp.ne.s32.totalorder %s100, %s101
      %p113 = scmp.eq.s32.totalorder %s23, 1
      %p114 = por %p112, %p113
      %p116 = scmp.ne.s32.totalorder %s101, %s115
      %p117 = scmp.eq.s32.totalorder %s23, 0
      %p118 = por %p116, %p117
      %s120 = sadd.s32 %s119, 1
      %p123 = scmp.eq.s32.totalorder %s17, 1
      %p124 = scmp.ne.s32.totalorder %s119, %s121
      %p125 = scmp.eq.s32.totalorder %s17, 0
      %p126 = por %p124, %p125
      %p127 = scmp.ne.s32.totalorder %s119, %s121
      %p128 = scmp.eq.s32.totalorder %s22, 1
      %p129 = por %p127, %p128
      %p130 = scmp.ne.s32.totalorder %s121, %s122
      %p131 = scmp.eq.s32.totalorder %s22, 0
      %p132 = por %p130, %p131
      %p133 = scmp.ne.s32.totalorder %s121, %s122
      %p134 = scmp.eq.s32.totalorder %s23, 1
      %p135 = por %p133, %p134
      %p137 = scmp.ne.s32.totalorder %s122, %s136
      %p138 = scmp.eq.s32.totalorder %s23, 0
      %p139 = por %p137, %p138
      %s141 = sadd.s32 %s140, 1
      %p144 = scmp.eq.s32.totalorder %s17, 1
      %p145 = scmp.ne.s32.totalorder %s140, %s142
      %p146 = scmp.eq.s32.totalorder %s17, 0
      %p147 = por %p145, %p146
      %p148 = scmp.ne.s32.totalorder %s140, %s142
      %p149 = scmp.eq.s32.totalorder %s22, 1
      %p150 = por %p148, %p149
      %p151 = scmp.ne.s32.totalorder %s142, %s143
      %p152 = scmp.eq.s32.totalorder %s22, 0
      %p153 = por %p151, %p152
      %p154 = scmp.ne.s32.totalorder %s142, %s143
      %p155 = scmp.eq.s32.totalorder %s23, 1
      %p156 = por %p154, %p155
      %p158 = scmp.ne.s32.totalorder %s143, %s157
      %p159 = scmp.eq.s32.totalorder %s23, 0
      %p160 = por %p158, %p159
      %s162 = sadd.s32 %s161, 1
      %p165 = scmp.eq.s32.totalorder %s17, 1
      %p166 = scmp.ne.s32.totalorder %s161, %s163
      %p167 = scmp.eq.s32.totalorder %s17, 0
      %p168 = por %p166, %p167
      %p169 = scmp.ne.s32.totalorder %s161, %s163
      %p170 = scmp.eq.s32.totalorder %s22, 1
      %p171 = por %p169, %p170
      %p172 = scmp.ne.s32.totalorder %s163, %s164
      %p173 = scmp.eq.s32.totalorder %s22, 0
      %p174 = por %p172, %p173
      %p175 = scmp.ne.s32.totalorder %s163, %s164
      %p176 = scmp.eq.s32.totalorder %s23, 1
      %p177 = por %p175, %p176
      %p179 = scmp.ne.s32.totalorder %s164, %s178
      %p180 = scmp.eq.s32.totalorder %s23, 0
      %p181 = por %p179, %p180
      %s183 = sadd.s32 %s182, 1
      %p186 = scmp.eq.s32.totalorder %s17, 1
      %p187 = scmp.ne.s32.totalorder %s182, %s184
      %p188 = scmp.eq.s32.totalorder %s17, 0
      %p189 = por %p187, %p188
      %p190 = scmp.ne.s32.totalorder %s182, %s184
      %p191 = scmp.eq.s32.totalorder %s22, 1
      %p192 = por %p190, %p191
      %p193 = scmp.ne.s32.totalorder %s184, %s185
      %p194 = scmp.eq.s32.totalorder %s22, 0
      %p195 = por %p193, %p194
      %p196 = scmp.ne.s32.totalorder %s184, %s185
      %p197 = scmp.eq.s32.totalorder %s23, 1
      %p198 = por %p196, %p197
      %p200 = scmp.ne.s32.totalorder %s185, %s199
      %p201 = scmp.eq.s32.totalorder %s23, 0
      %p202 = por %p200, %p201
      %s204 = sadd.s32 %s203, 1
      %p207 = scmp.eq.s32.totalorder %s17, 1
      %p208 = scmp.ne.s32.totalorder %s203, %s205
      %p209 = scmp.eq.s32.totalorder %s17, 0
      %p210 = por %p208, %p209
      %p211 = scmp.ne.s32.totalorder %s203, %s205
      %p212 = scmp.eq.s32.totalorder %s22, 1
      %p213 = por %p211, %p212
      %p214 = scmp.ne.s32.totalorder %s205, %s206
      %p215 = scmp.eq.s32.totalorder %s22, 0
      %p216 = por %p214, %p215
      %p217 = scmp.ne.s32.totalorder %s205, %s206
      %p218 = scmp.eq.s32.totalorder %s23, 1
      %p219 = por %p217, %p218
      %p221 = scmp.ne.s32.totalorder %s206, %s220
      %p222 = scmp.eq.s32.totalorder %s23, 0
      %p223 = por %p221, %p222
      %s224 = ssub.s32 %s17, %s24
      %p225 = scmp.eq.s32.totalorder %s224, 0
      %s227 = sadd.s32 %s226, 1
      %s228 = scalar_select %p225, %s226, %s227
      %p231 = pneg %p225
      %p232 = scmp.eq.s32.totalorder %s17, 1
      %p233 = por %p231, %p232
      %p234 = scmp.ne.s32.totalorder %s226, %s229
      %p235 = scmp.eq.s32.totalorder %s17, 0
      %p236 = por %p234, %p235
      %p237 = scmp.ne.s32.totalorder %s226, %s229
      %p238 = scmp.eq.s32.totalorder %s22, 1
      %p239 = por %p237, %p238
      %p240 = scmp.ne.s32.totalorder %s229, %s230
      %p241 = scmp.eq.s32.totalorder %s22, 0
      %p242 = por %p240, %p241
      %p243 = scmp.ne.s32.totalorder %s229, %s230
      %p244 = scmp.eq.s32.totalorder %s23, 1
      %p245 = por %p243, %p244
      %p247 = scmp.ne.s32.totalorder %s230, %s246
      %p248 = scmp.eq.s32.totalorder %s23, 0
      %p249 = por %p247, %p248
      %p250 = scmp.le.s32.totalorder 1, %s17
      %p251 = scmp.lt.s32.totalorder %s17, 3
      %p252 = pnand %p250, %p251
      %p253 = pneg %p252
      // Predicated region
      $region9: #{tpu_custom_call.1} parent=5 // pred_check
        _
      $region10: #{tpu_custom_call.1} parent=5 // pred_check_branch
        %255 = sbr.rel (%p252) target = $region12
      $region11: #{tpu_custom_call.1} parent=5 // pred_region
        %s256 = ssub.s32 %s17, 1
        // Predicated region
        $region13: #{tpu_custom_call.1} parent=11 // pred_check
          %p257 = pneg %p90
        $region14: #{tpu_custom_call.1} parent=11 // pred_check_branch
          %259 = sbr.rel (%p257) target = $region16
        $region15: #{tpu_custom_call.1} parent=11 // pred_region
          _
        $region16: #{tpu_custom_call.1} parent=11 // pred_fallthru
          _
        // Predicated region
        $region17: #{tpu_custom_call.1} parent=11 // pred_check
          %p260 = pneg %p111
        $region18: #{tpu_custom_call.1} parent=11 // pred_check_branch
          %262 = sbr.rel (%p260) target = $region20
        $region19: #{tpu_custom_call.1} parent=11 // pred_region
          _
        $region20: #{tpu_custom_call.1} parent=11 // pred_fallthru
          _
        // Predicated region
        $region21: #{tpu_custom_call.1} parent=11 // pred_check
          %p263 = pneg %p132
        $region22: #{tpu_custom_call.1} parent=11 // pred_check_branch
          %265 = sbr.rel (%p263) target = $region24
        $region23: #{tpu_custom_call.1} parent=11 // pred_region
          _
        $region24: #{tpu_custom_call.1} parent=11 // pred_fallthru
          _
        // Predicated region
        $region25: #{tpu_custom_call.1} parent=11 // pred_check
          %p266 = pneg %p153
        $region26: #{tpu_custom_call.1} parent=11 // pred_check_branch
          %268 = sbr.rel (%p266) target = $region28
        $region27: #{tpu_custom_call.1} parent=11 // pred_region
          _
        $region28: #{tpu_custom_call.1} parent=11 // pred_fallthru
          _
        // Predicated region
        $region29: #{tpu_custom_call.1} parent=11 // pred_check
          %p269 = pneg %p174
        $region30: #{tpu_custom_call.1} parent=11 // pred_check_branch
          %271 = sbr.rel (%p269) target = $region32
        $region31: #{tpu_custom_call.1} parent=11 // pred_region
          _
        $region32: #{tpu_custom_call.1} parent=11 // pred_fallthru
          _
        // Predicated region
        $region33: #{tpu_custom_call.1} parent=11 // pred_check
          %p272 = pneg %p195
        $region34: #{tpu_custom_call.1} parent=11 // pred_check_branch
          %274 = sbr.rel (%p272) target = $region36
        $region35: #{tpu_custom_call.1} parent=11 // pred_region
          _
        $region36: #{tpu_custom_call.1} parent=11 // pred_fallthru
          _
        // Predicated region
        $region37: #{tpu_custom_call.1} parent=11 // pred_check
          %p275 = pneg %p216
        $region38: #{tpu_custom_call.1} parent=11 // pred_check_branch
          %277 = sbr.rel (%p275) target = $region40
        $region39: #{tpu_custom_call.1} parent=11 // pred_region
          _
        $region40: #{tpu_custom_call.1} parent=11 // pred_fallthru
          _
      $region12: #{tpu_custom_call.1} parent=5 // pred_fallthru
        _
      %p278 = scmp.lt.s32.totalorder %s17, 2
      // Predicated region
      $region41: #{tpu_custom_call.1} parent=5 // pred_check
        %p279 = pneg %p278
      $region42: #{tpu_custom_call.1} parent=5 // pred_check_branch
        %281 = sbr.rel (%p279) target = $region44
      $region43: #{tpu_custom_call.1} parent=5 // pred_region
        // Predicated region
        $region45: #{tpu_custom_call.1} parent=43 // pred_check
          %p282 = pneg %p37
        $region46: #{tpu_custom_call.1} parent=43 // pred_check_branch
          %284 = sbr.rel (%p282) target = $region48
        $region47: #{tpu_custom_call.1} parent=43 // pred_region
          %s285 = smul.u32 16, %s17
          %s286 = ssub.s32 25, %s285
          %p287 = scmp.lt.s32.totalorder %s286, 16
          %s288 = scalar_select %p287, %s286, 16
          %s289 = smul.u32 8, %s288
          %p290 = scmp.lt.s32.totalorder %s285, 24
          %s291 = scalar_select %p290, %s285, 24
          %s292 = smul.addr %s291, 8
          %s293 = scalar_lea.vmem %s0, %s292
          %s294 = smul.u32 16, %s17
          %s295 = ssub.s32 25, %s294
          %p296 = scmp.lt.s32.totalorder %s295, 16
          %s297 = scalar_select %p296, %s295, 16
          %s298 = smul.u32 8, %s297
        $region48: #{tpu_custom_call.1} parent=43 // pred_fallthru
          _
        // Predicated region
        $region49: #{tpu_custom_call.1} parent=43 // pred_check
          %p299 = pneg %p63
        $region50: #{tpu_custom_call.1} parent=43 // pred_check_branch
          %301 = sbr.rel (%p299) target = $region52
        $region51: #{tpu_custom_call.1} parent=43 // pred_region
          %s302 = smul.u32 16, %s17
          %s303 = ssub.s32 25, %s302
          %p304 = scmp.lt.s32.totalorder %s303, 16
          %s305 = scalar_select %p304, %s303, 16
          %s306 = smul.u32 8, %s305
          %p307 = scmp.lt.s32.totalorder %s302, 24
          %s308 = scalar_select %p307, %s302, 24
          %s309 = smul.addr %s308, 8
          %s310 = scalar_lea.vmem %s1, %s309
          %s311 = smul.u32 16, %s17
          %s312 = ssub.s32 25, %s311
          %p313 = scmp.lt.s32.totalorder %s312, 16
          %s314 = scalar_select %p313, %s312, 16
          %s315 = smul.u32 8, %s314
        $region52: #{tpu_custom_call.1} parent=43 // pred_fallthru
          _
      $region44: #{tpu_custom_call.1} parent=5 // pred_fallthru
        _
      %p316 = scmp.le.s32.totalorder 1, %s17
      %p317 = scmp.lt.s32.totalorder %s17, 3
      %p318 = pnand %p316, %p317
      %p319 = pneg %p318
      // Predicated region
      $region53: #{tpu_custom_call.1} parent=5 // pred_check
        _
      $region54: #{tpu_custom_call.1} parent=5 // pred_check_branch
        %321 = sbr.rel (%p318) target = $region56
      $region55: #{tpu_custom_call.1} parent=5 // pred_region
        %s322 = ssub.s32 %s17, 1
        %s323 = smul.u32 16, %s22
        %s324 = ssub.s32 25, %s323
        %p325 = scmp.lt.s32.totalorder %s324, 16
        %s326 = scalar_select %p325, %s324, 16
        %s327 = smul.u32 8, %s326
        %p328 = scmp.lt.s32.totalorder %s323, 24
        %s329 = scalar_select %p328, %s323, 24
        %s330 = smul.addr %s329, 8
        %s331 = scalar_lea.vmem %s0, %s330
        %p332 = pneg %p43
        %p333 = pneg %p40
        %s334 = smul.u32 16, %s22
        %s335 = ssub.s32 25, %s334
        %p336 = scmp.lt.s32.totalorder %s335, 16
        %s337 = scalar_select %p336, %s335, 16
        %s338 = smul.u32 8, %s337
        %p339 = scmp.lt.s32.totalorder %s334, 24
        %s340 = scalar_select %p339, %s334, 24
        %s341 = smul.addr %s340, 8
        %s342 = scalar_lea.vmem %s1, %s341
        %p343 = pneg %p69
        %p344 = pneg %p66
        %p345 = pneg %p90
        %p346 = pneg %p87
        %p347 = pneg %p111
        %p348 = pneg %p108
        %p349 = pneg %p132
        %p350 = pneg %p129
        %p351 = pneg %p153
        %p352 = pneg %p150
        %p353 = pneg %p174
        %p354 = pneg %p171
        %p355 = pneg %p195
        %p356 = pneg %p192
        %p357 = pneg %p216
        %p358 = pneg %p213
        %p359 = pneg %p242
        %p360 = pneg %p239
        %s361 = sand.u32 %s229, 1
        %s362 = sand.u32 %s229, 1
        %s363 = smul.addr %s362, 128
        %s364 = scalar_lea.vmem [#allocation3], %s363
        %s365 = smul.u32 16, %s22
        %s366 = ssub.s32 25, %s365
        %p367 = scmp.lt.s32.totalorder %s366, 16
        %s368 = scalar_select %p367, %s366, 16
        %s369 = smul.u32 8, %s368
        %p370 = scmp.lt.s32.totalorder %s365, 24
        %s371 = scalar_select %p370, %s365, 24
        %s372 = smul.addr %s371, 8
        %s373 = scalar_lea.vmem %s0, %s372
        %s374 = smul.u32 16, %s22
        %s375 = ssub.s32 25, %s374
        %p376 = scmp.lt.s32.totalorder %s375, 16
        %s377 = scalar_select %p376, %s375, 16
        %s378 = smul.u32 8, %s377
        %s379 = smul.u32 16, %s22
        %s380 = ssub.s32 25, %s379
        %p381 = scmp.lt.s32.totalorder %s380, 16
        %s382 = scalar_select %p381, %s380, 16
        %s383 = smul.u32 8, %s382
        %p384 = scmp.lt.s32.totalorder %s379, 24
        %s385 = scalar_select %p384, %s379, 24
        %s386 = smul.addr %s385, 8
        %s387 = scalar_lea.vmem %s1, %s386
        %s388 = smul.u32 16, %s22
        %s389 = ssub.s32 25, %s388
        %p390 = scmp.lt.s32.totalorder %s389, 16
        %s391 = scalar_select %p390, %s389, 16
        %s392 = smul.u32 8, %s391
        %s393 = smul.u32 16, %s22
        %s394 = ssub.s32 25, %s393
        %p395 = scmp.lt.s32.totalorder %s394, 16
        %s396 = scalar_select %p395, %s394, 16
        %s397 = smul.u32 8, %s396
        %v399 = vld [vmem:[%s373] sm:$0xff]
        %v400 = vld [vmem:[%s373 + $0x8] sm:$0xff]
        %v401 = vld [vmem:[%s373 + $0x10] sm:$0xff]
        %v402 = vld [vmem:[%s373 + $0x18] sm:$0xff]
        %v403 = vld [vmem:[%s373 + $0x20] sm:$0xff]
        %v404 = vld [vmem:[%s373 + $0x28] sm:$0xff]
        %v405 = vld [vmem:[%s373 + $0x30] sm:$0xff]
        %v406 = vld [vmem:[%s373 + $0x38] sm:$0xff]
        %v407 = vld [vmem:[%s373 + $0x40] sm:$0xff]
        %v408 = vld [vmem:[%s373 + $0x48] sm:$0xff]
        %v409 = vld [vmem:[%s373 + $0x50] sm:$0xff]
        %v410 = vld [vmem:[%s373 + $0x58] sm:$0xff]
        %v411 = vld [vmem:[%s373 + $0x60] sm:$0xff]
        %v412 = vld [vmem:[%s373 + $0x68] sm:$0xff]
        %v413 = vld [vmem:[%s373 + $0x70] sm:$0xff]
        %v414 = vld [vmem:[%s373 + $0x78] sm:$0xff]
        %v415 = vpack.c.bf16 %v400, %v399
        %v416 = vpack.c.bf16 %v402, %v401
        %v417 = vpack.c.bf16 %v404, %v403
        %v418 = vpack.c.bf16 %v406, %v405
        %v419 = vpack.c.bf16 %v408, %v407
        %v420 = vpack.c.bf16 %v410, %v409
        %v421 = vpack.c.bf16 %v412, %v411
        %v422 = vpack.c.bf16 %v414, %v413
        %v423 = vld [vmem:[%s2] sm:$0xff]
        %v424 = vld [vmem:[%s2 + $0x8] sm:$0xff]
        %v425 = vpack.c.bf16 %v424, %v423
        %v426 = vld [vmem:[%s387] sm:$0xff]
        %v427 = vld [vmem:[%s387 + $0x8] sm:$0xff]
        %v428 = vld [vmem:[%s387 + $0x10] sm:$0xff]
        %v429 = vld [vmem:[%s387 + $0x18] sm:$0xff]
        %v430 = vld [vmem:[%s387 + $0x20] sm:$0xff]
        %v431 = vld [vmem:[%s387 + $0x28] sm:$0xff]
        %v432 = vld [vmem:[%s387 + $0x30] sm:$0xff]
        %v433 = vld [vmem:[%s387 + $0x38] sm:$0xff]
        %v434 = vld [vmem:[%s387 + $0x40] sm:$0xff]
        %v435 = vld [vmem:[%s387 + $0x48] sm:$0xff]
        %v436 = vld [vmem:[%s387 + $0x50] sm:$0xff]
        %v437 = vld [vmem:[%s387 + $0x58] sm:$0xff]
        %v438 = vld [vmem:[%s387 + $0x60] sm:$0xff]
        %v439 = vld [vmem:[%s387 + $0x68] sm:$0xff]
        %v440 = vld [vmem:[%s387 + $0x70] sm:$0xff]
        %v441 = vld [vmem:[%s387 + $0x78] sm:$0xff]
        %v442 = vpack.c.bf16 %v427, %v426
        %v443 = vpack.c.bf16 %v429, %v428
        %v444 = vpack.c.bf16 %v431, %v430
        %v445 = vpack.c.bf16 %v433, %v432
        %v446 = vpack.c.bf16 %v435, %v434
        %v447 = vpack.c.bf16 %v437, %v436
        %v448 = vpack.c.bf16 %v439, %v438
        %v449 = vpack.c.bf16 %v441, %v440
        %v450 = vld [vmem:[%s3] sm:$0xf]
        %v451 = vpack.c.bf16 %v450, %v450
        %vm452 = vcmask 31744
        %v454 = vsel %vm452, %v442, 0
        %v457 = vsel %vm452, %v443, 0
        %v460 = vsel %vm452, %v444, 0
        %v463 = vsel %vm452, %v445, 0
        %v466 = vsel %vm452, %v446, 0
        %v469 = vsel %vm452, %v447, 0
        %v472 = vsel %vm452, %v448, 0
        %v475 = vsel %vm452, %v449, 0
        %vm477 = vcmask 1041408
        %v479 = vsel %vm477, %v451, 0
        %481 = vmatpush.bf16.msra.mxu0 0
        %482 = vmatpush.bf16.msra.mxu0 0
        %483 = vmatpush.bf16.msra.mxu0 0
        %484 = vmatpush.bf16.msra.mxu0 0
        %485 = vmatpush.bf16.msra.mxu0 0
        %486 = vmatpush.bf16.msra.mxu0 0
        %487 = vmatpush.bf16.msra.mxu0 0
        %488 = vmatpush.bf16.msra.mxu0 %v479
        %489 = vmatmul.bf16.gmra.mxu0 %v454
        %v490 = vpop.f32.mrf.mxu0
        %v491 = vadd.f32 0.0, %v490
        %v492 = vpop.f32.mrf.mxu0
        %v493 = vadd.f32 0.0, %v492
        %494 = vmatmul.bf16.gmra.mxu0 %v457
        %v495 = vpop.f32.mrf.mxu0
        %v496 = vadd.f32 0.0, %v495
        %v497 = vpop.f32.mrf.mxu0
        %v498 = vadd.f32 0.0, %v497
        %499 = vmatmul.bf16.gmra.mxu0 %v460
        %v500 = vpop.f32.mrf.mxu0
        %v501 = vadd.f32 0.0, %v500
        %v502 = vpop.f32.mrf.mxu0
        %v503 = vadd.f32 0.0, %v502
        %504 = vmatmul.bf16.gmra.mxu0 %v463
        %v505 = vpop.f32.mrf.mxu0
        %v506 = vadd.f32 0.0, %v505
        %v507 = vpop.f32.mrf.mxu0
        %v508 = vadd.f32 0.0, %v507
        %509 = vmatmul.bf16.gmra.mxu0 %v466
        %v510 = vpop.f32.mrf.mxu0
        %v511 = vadd.f32 0.0, %v510
        %v512 = vpop.f32.mrf.mxu0
        %v513 = vadd.f32 0.0, %v512
        %514 = vmatmul.bf16.gmra.mxu0 %v469
        %v515 = vpop.f32.mrf.mxu0
        %v516 = vadd.f32 0.0, %v515
        %v517 = vpop.f32.mrf.mxu0
        %v518 = vadd.f32 0.0, %v517
        %519 = vmatmul.bf16.gmra.mxu0 %v472
        %v520 = vpop.f32.mrf.mxu0
        %v521 = vadd.f32 0.0, %v520
        %v522 = vpop.f32.mrf.mxu0
        %v523 = vadd.f32 0.0, %v522
        %524 = vmatmul.bf16.gmra.mxu0 %v475
        %v525 = vpop.f32.mrf.mxu0
        %v526 = vadd.f32 0.0, %v525
        %v527 = vpop.f32.mrf.mxu0
        %v528 = vadd.f32 0.0, %v527
        %529 = vdwg.mxu0
        %vm530 = vcmask 130048
        %v532 = vsel %vm530, %v415, 0
        %v535 = vsel %vm530, %v416, 0
        %v538 = vsel %vm530, %v417, 0
        %v541 = vsel %vm530, %v418, 0
        %v544 = vsel %vm530, %v419, 0
        %v547 = vsel %vm530, %v420, 0
        %v550 = vsel %vm530, %v421, 0
        %v553 = vsel %vm530, %v422, 0
        %555 = vmatpush.bf16.msra.mxu0 0
        %556 = vmatpush.bf16.msra.mxu0 0
        %557 = vmatpush.bf16.msra.mxu0 0
        %558 = vmatpush.bf16.msra.mxu0 0
        %559 = vmatpush.bf16.msra.mxu0 0
        %560 = vmatpush.bf16.msra.mxu0 0
        %561 = vmatpush.bf16.msra.mxu0 0
        %562 = vmatpush.bf16.msra.mxu0 %v425
        %563 = vmatmul.bf16.gmra.mxu0 %v532
        %v564 = vpop.f32.mrf.mxu0
        %v565 = vadd.f32 %v491, %v564
        %v566 = vpop.f32.mrf.mxu0
        %v567 = vadd.f32 %v493, %v566
        %568 = vmatmul.bf16.gmra.mxu0 %v535
        %v569 = vpop.f32.mrf.mxu0
        %v570 = vadd.f32 %v496, %v569
        %v571 = vpop.f32.mrf.mxu0
        %v572 = vadd.f32 %v498, %v571
        %573 = vmatmul.bf16.gmra.mxu0 %v538
        %v574 = vpop.f32.mrf.mxu0
        %v575 = vadd.f32 %v501, %v574
        %v576 = vpop.f32.mrf.mxu0
        %v577 = vadd.f32 %v503, %v576
        %578 = vmatmul.bf16.gmra.mxu0 %v541
        %v579 = vpop.f32.mrf.mxu0
        %v580 = vadd.f32 %v506, %v579
        %v581 = vpop.f32.mrf.mxu0
        %v582 = vadd.f32 %v508, %v581
        %583 = vmatmul.bf16.gmra.mxu0 %v544
        %v584 = vpop.f32.mrf.mxu0
        %v585 = vadd.f32 %v511, %v584
        %v586 = vpop.f32.mrf.mxu0
        %v587 = vadd.f32 %v513, %v586
        %588 = vmatmul.bf16.gmra.mxu0 %v547
        %v589 = vpop.f32.mrf.mxu0
        %v590 = vadd.f32 %v516, %v589
        %v591 = vpop.f32.mrf.mxu0
        %v592 = vadd.f32 %v518, %v591
        %593 = vmatmul.bf16.gmra.mxu0 %v550
        %v594 = vpop.f32.mrf.mxu0
        %v595 = vadd.f32 %v521, %v594
        %v596 = vpop.f32.mrf.mxu0
        %v597 = vadd.f32 %v523, %v596
        %598 = vmatmul.bf16.gmra.mxu0 %v553
        %v599 = vpop.f32.mrf.mxu0
        %v600 = vadd.f32 %v526, %v599
        %v601 = vpop.f32.mrf.mxu0
        %v602 = vadd.f32 %v528, %v601
        %603 = vdwg.mxu0
        %v604 = vld [vmem:[%s4] sm:$0x1]
        %v606 = vperm.slane %v604, 0
        %v608 = vadd.f32 %v565, %v606
        %v609 = vadd.f32 %v567, %v606
        %v610 = vadd.f32 %v570, %v606
        %v611 = vadd.f32 %v572, %v606
        %v612 = vadd.f32 %v575, %v606
        %v613 = vadd.f32 %v577, %v606
        %v614 = vadd.f32 %v580, %v606
        %v615 = vadd.f32 %v582, %v606
        %v616 = vadd.f32 %v585, %v606
        %v617 = vadd.f32 %v587, %v606
        %v618 = vadd.f32 %v590, %v606
        %v619 = vadd.f32 %v592, %v606
        %v620 = vadd.f32 %v595, %v606
        %v621 = vadd.f32 %v597, %v606
        %v622 = vadd.f32 %v600, %v606
        %v623 = vadd.f32 %v602, %v606
        %v624 = vmax.f32 %v608, 0.0
        %v625 = vmax.f32 %v609, 0.0
        %v626 = vmax.f32 %v610, 0.0
        %v627 = vmax.f32 %v611, 0.0
        %v628 = vmax.f32 %v612, 0.0
        %v629 = vmax.f32 %v613, 0.0
        %v630 = vmax.f32 %v614, 0.0
        %v631 = vmax.f32 %v615, 0.0
        %v632 = vmax.f32 %v616, 0.0
        %v633 = vmax.f32 %v617, 0.0
        %v634 = vmax.f32 %v618, 0.0
        %v635 = vmax.f32 %v619, 0.0
        %v636 = vmax.f32 %v620, 0.0
        %v637 = vmax.f32 %v621, 0.0
        %v638 = vmax.f32 %v622, 0.0
        %v639 = vmax.f32 %v623, 0.0
        %v640 = vpack.c.bf16 %v625, %v624
        %v641 = vpack.c.bf16 %v627, %v626
        %v642 = vpack.c.bf16 %v629, %v628
        %v643 = vpack.c.bf16 %v631, %v630
        %v644 = vpack.c.bf16 %v633, %v632
        %v645 = vpack.c.bf16 %v635, %v634
        %v646 = vpack.c.bf16 %v637, %v636
        %v647 = vpack.c.bf16 %v639, %v638
        %v648 = vld [vmem:[%s5] sm:$0xff]
        %v649 = vld [vmem:[%s5 + $0x8] sm:$0xff]
        %v650 = vld [vmem:[%s5 + $0x10] sm:$0xff]
        %v651 = vld [vmem:[%s5 + $0x18] sm:$0xff]
        %v652 = vld [vmem:[%s5 + $0x20] sm:$0xff]
        %v653 = vld [vmem:[%s5 + $0x28] sm:$0xff]
        %v654 = vld [vmem:[%s5 + $0x30] sm:$0xff]
        %v655 = vld [vmem:[%s5 + $0x38] sm:$0xff]
        %v656 = vpack.c.bf16 %v649, %v648
        %v657 = vpack.c.bf16 %v651, %v650
        %v658 = vpack.c.bf16 %v653, %v652
        %v659 = vpack.c.bf16 %v655, %v654
        %v660 = vld [vmem:[%s6] sm:$0x1]
        %v662 = vperm.slane %v660, 0
        %vm664 = vcmask 523264
        %v666 = vsel %vm664, %v640, 0
        %v669 = vsel %vm664, %v641, 0
        %v672 = vsel %vm664, %v642, 0
        %v675 = vsel %vm664, %v643, 0
        %v678 = vsel %vm664, %v644, 0
        %v681 = vsel %vm664, %v645, 0
        %v684 = vsel %vm664, %v646, 0
        %v687 = vsel %vm664, %v647, 0
        %689 = vmatpush.bf16.msra.mxu0 0
        %690 = vmatpush.bf16.msra.mxu0 0
        %691 = vmatpush.bf16.msra.mxu0 0
        %692 = vmatpush.bf16.msra.mxu0 0
        %693 = vmatpush.bf16.msra.mxu0 %v659
        %694 = vmatpush.bf16.msra.mxu0 %v658
        %695 = vmatpush.bf16.msra.mxu0 %v657
        %696 = vmatpush.bf16.msra.mxu0 %v656
        %697 = vmatmul.bf16.gmra.mxu0 %v666
        %v698 = vpop.f32.mrf.mxu0
        %v699 = vadd.f32 %v662, %v698
        %v700 = vpop.f32.mrf.mxu0
        %v701 = vadd.f32 %v662, %v700
        %702 = vmatmul.bf16.gmra.mxu0 %v669
        %v703 = vpop.f32.mrf.mxu0
        %v704 = vadd.f32 %v662, %v703
        %v705 = vpop.f32.mrf.mxu0
        %v706 = vadd.f32 %v662, %v705
        %707 = vmatmul.bf16.gmra.mxu0 %v672
        %v708 = vpop.f32.mrf.mxu0
        %v709 = vadd.f32 %v662, %v708
        %v710 = vpop.f32.mrf.mxu0
        %v711 = vadd.f32 %v662, %v710
        %712 = vmatmul.bf16.gmra.mxu0 %v675
        %v713 = vpop.f32.mrf.mxu0
        %v714 = vadd.f32 %v662, %v713
        %v715 = vpop.f32.mrf.mxu0
        %v716 = vadd.f32 %v662, %v715
        %717 = vmatmul.bf16.gmra.mxu0 %v678
        %v718 = vpop.f32.mrf.mxu0
        %v719 = vadd.f32 %v662, %v718
        %v720 = vpop.f32.mrf.mxu0
        %v721 = vadd.f32 %v662, %v720
        %722 = vmatmul.bf16.gmra.mxu0 %v681
        %v723 = vpop.f32.mrf.mxu0
        %v724 = vadd.f32 %v662, %v723
        %v725 = vpop.f32.mrf.mxu0
        %v726 = vadd.f32 %v662, %v725
        %727 = vmatmul.bf16.gmra.mxu0 %v684
        %v728 = vpop.f32.mrf.mxu0
        %v729 = vadd.f32 %v662, %v728
        %v730 = vpop.f32.mrf.mxu0
        %v731 = vadd.f32 %v662, %v730
        %732 = vmatmul.bf16.gmra.mxu0 %v687
        %v733 = vpop.f32.mrf.mxu0
        %v734 = vadd.f32 %v662, %v733
        %v735 = vpop.f32.mrf.mxu0
        %v736 = vadd.f32 %v662, %v735
        %737 = vdwg.mxu0
        %v738 = vmax.f32 %v699, 0.0
        %v739 = vmax.f32 %v701, 0.0
        %v740 = vmax.f32 %v704, 0.0
        %v741 = vmax.f32 %v706, 0.0
        %v742 = vmax.f32 %v709, 0.0
        %v743 = vmax.f32 %v711, 0.0
        %v744 = vmax.f32 %v714, 0.0
        %v745 = vmax.f32 %v716, 0.0
        %v746 = vmax.f32 %v719, 0.0
        %v747 = vmax.f32 %v721, 0.0
        %v748 = vmax.f32 %v724, 0.0
        %v749 = vmax.f32 %v726, 0.0
        %v750 = vmax.f32 %v729, 0.0
        %v751 = vmax.f32 %v731, 0.0
        %v752 = vmax.f32 %v734, 0.0
        %v753 = vmax.f32 %v736, 0.0
        %v754 = vld [vmem:[%s7] sm:$0x1]
        %v756 = vperm.slane %v754, 0
        %v758 = vmul.f32 %v738, %v756
        %v759 = vmul.f32 %v739, %v756
        %v760 = vmul.f32 %v740, %v756
        %v761 = vmul.f32 %v741, %v756
        %v762 = vmul.f32 %v742, %v756
        %v763 = vmul.f32 %v743, %v756
        %v764 = vmul.f32 %v744, %v756
        %v765 = vmul.f32 %v745, %v756
        %v766 = vmul.f32 %v746, %v756
        %v767 = vmul.f32 %v747, %v756
        %v768 = vmul.f32 %v748, %v756
        %v769 = vmul.f32 %v749, %v756
        %v770 = vmul.f32 %v750, %v756
        %v771 = vmul.f32 %v751, %v756
        %v772 = vmul.f32 %v752, %v756
        %v773 = vmul.f32 %v753, %v756
        %v774 = vsel %vm664, %v758, 0.0
        %775 = vadd.xlane.f32.xlu0 %v774
        %v776 = vpop.xlane.xlu0 %775
        %v777 = vsel %vm664, %v759, 0.0
        %778 = vadd.xlane.f32.xlu0 %v777
        %v779 = vpop.xlane.xlu0 %778
        %v780 = vsel %vm664, %v760, 0.0
        %781 = vadd.xlane.f32.xlu0 %v780
        %v782 = vpop.xlane.xlu0 %781
        %v783 = vsel %vm664, %v761, 0.0
        %784 = vadd.xlane.f32.xlu0 %v783
        %v785 = vpop.xlane.xlu0 %784
        %v786 = vsel %vm664, %v762, 0.0
        %787 = vadd.xlane.f32.xlu0 %v786
        %v788 = vpop.xlane.xlu0 %787
        %v789 = vsel %vm664, %v763, 0.0
        %790 = vadd.xlane.f32.xlu0 %v789
        %v791 = vpop.xlane.xlu0 %790
        %v792 = vsel %vm664, %v764, 0.0
        %793 = vadd.xlane.f32.xlu0 %v792
        %v794 = vpop.xlane.xlu0 %793
        %v795 = vsel %vm664, %v765, 0.0
        %796 = vadd.xlane.f32.xlu0 %v795
        %v797 = vpop.xlane.xlu0 %796
        %v798 = vsel %vm664, %v766, 0.0
        %799 = vadd.xlane.f32.xlu0 %v798
        %v800 = vpop.xlane.xlu0 %799
        %v801 = vsel %vm664, %v767, 0.0
        %802 = vadd.xlane.f32.xlu0 %v801
        %v803 = vpop.xlane.xlu0 %802
        %v804 = vsel %vm664, %v768, 0.0
        %805 = vadd.xlane.f32.xlu0 %v804
        %v806 = vpop.xlane.xlu0 %805
        %v807 = vsel %vm664, %v769, 0.0
        %808 = vadd.xlane.f32.xlu0 %v807
        %v809 = vpop.xlane.xlu0 %808
        %v810 = vsel %vm664, %v770, 0.0
        %811 = vadd.xlane.f32.xlu0 %v810
        %v812 = vpop.xlane.xlu0 %811
        %v813 = vsel %vm664, %v771, 0.0
        %814 = vadd.xlane.f32.xlu0 %v813
        %v815 = vpop.xlane.xlu0 %814
        %v816 = vsel %vm664, %v772, 0.0
        %817 = vadd.xlane.f32.xlu0 %v816
        %v818 = vpop.xlane.xlu0 %817
        %v819 = vsel %vm664, %v773, 0.0
        %820 = vadd.xlane.f32.xlu0 %v819
        %v821 = vpop.xlane.xlu0 %820
        %v822 = vld [vmem:[#allocation2] sm:$0x1]
        %v824 = vperm.slane %v822, 0
        %v826 = vadd.f32 %v776, %v824
        %v827 = vadd.f32 %v779, %v824
        %v828 = vadd.f32 %v782, %v824
        %v829 = vadd.f32 %v785, %v824
        %v830 = vadd.f32 %v788, %v824
        %v831 = vadd.f32 %v791, %v824
        %v832 = vadd.f32 %v794, %v824
        %v833 = vadd.f32 %v797, %v824
        %v834 = vadd.f32 %v800, %v824
        %v835 = vadd.f32 %v803, %v824
        %v836 = vadd.f32 %v806, %v824
        %v837 = vadd.f32 %v809, %v824
        %v838 = vadd.f32 %v812, %v824
        %v839 = vadd.f32 %v815, %v824
        %v840 = vadd.f32 %v818, %v824
        %v841 = vadd.f32 %v821, %v824
        %v842 = vtanh.pop %v826
        %v843 = vtanh.pop %v827
        %v844 = vtanh.pop %v828
        %v845 = vtanh.pop %v829
        %v846 = vtanh.pop %v830
        %v847 = vtanh.pop %v831
        %v848 = vtanh.pop %v832
        %v849 = vtanh.pop %v833
        %v850 = vtanh.pop %v834
        %v851 = vtanh.pop %v835
        %v852 = vtanh.pop %v836
        %v853 = vtanh.pop %v837
        %v854 = vtanh.pop %v838
        %v855 = vtanh.pop %v839
        %v856 = vtanh.pop %v840
        %v857 = vtanh.pop %v841
        %vm858 = vcmask 7168
        %859 = vst.msk [vmem:[%s364] sm:$0xff] %vm858, %v842
        %860 = vst.msk [vmem:[%s364 + $0x8] sm:$0xff] %vm858, %v843
        %861 = vst.msk [vmem:[%s364 + $0x10] sm:$0xff] %vm858, %v844
        %862 = vst.msk [vmem:[%s364 + $0x18] sm:$0xff] %vm858, %v845
        %863 = vst.msk [vmem:[%s364 + $0x20] sm:$0xff] %vm858, %v846
        %864 = vst.msk [vmem:[%s364 + $0x28] sm:$0xff] %vm858, %v847
        %865 = vst.msk [vmem:[%s364 + $0x30] sm:$0xff] %vm858, %v848
        %866 = vst.msk [vmem:[%s364 + $0x38] sm:$0xff] %vm858, %v849
        %867 = vst.msk [vmem:[%s364 + $0x40] sm:$0xff] %vm858, %v850
        %868 = vst.msk [vmem:[%s364 + $0x48] sm:$0xff] %vm858, %v851
        %869 = vst.msk [vmem:[%s364 + $0x50] sm:$0xff] %vm858, %v852
        %870 = vst.msk [vmem:[%s364 + $0x58] sm:$0xff] %vm858, %v853
        %871 = vst.msk [vmem:[%s364 + $0x60] sm:$0xff] %vm858, %v854
        %872 = vst.msk [vmem:[%s364 + $0x68] sm:$0xff] %vm858, %v855
        %873 = vst.msk [vmem:[%s364 + $0x70] sm:$0xff] %vm858, %v856
        %874 = vst.msk [vmem:[%s364 + $0x78] sm:$0xff] %vm858, %v857
        %s875 = sand.u32 %s229, 1
        %s876 = sand.u32 %s229, 1
        %s877 = smul.addr %s876, 128
        %s878 = scalar_lea.vmem [#allocation3], %s877
        // Predicated region
        $region57: #{tpu_custom_call.1} parent=55 // pred_check
          %p879 = pneg %p239
        $region58: #{tpu_custom_call.1} parent=55 // pred_check_branch
          %881 = sbr.rel (%p879) target = $region60
        $region59: #{tpu_custom_call.1} parent=55 // pred_region
          %s882 = smul.u32 16, %s22
          %s883 = ssub.s32 25, %s882
          %p884 = scmp.lt.s32.totalorder %s883, 16
          %s885 = scalar_select %p884, %s883, 16
          %s886 = smul.u32 8, %s885
          %p887 = scmp.ne.s32.totalorder 0, %s886
          %s888 = smul.addr %s882, 8
          %s889 = scalar_lea.vmem %s9, %s888
          // Predicated region
          $region61: #{tpu_custom_call.1} parent=59 // pred_check
            %p890 = pneg %p887
          $region62: #{tpu_custom_call.1} parent=59 // pred_check_branch
            %892 = sbr.rel (%p890) target = $region64
          $region63: #{tpu_custom_call.1} parent=59 // pred_region
            // Predicated region
            $region65: #{tpu_custom_call.1} parent=63 // pred_check
              _
            $region66: #{tpu_custom_call.1} parent=63 // pred_check_branch
              %894 = sbr.rel (0) target = $region68
            $region67: #{tpu_custom_call.1} parent=63 // pred_region
              // Predicated region
              $region87: #{tpu_custom_call.1} parent=67 // pred_check
                _
              $region88: #{tpu_custom_call.1} parent=67 // pred_check_branch
                %974 = sbr.rel (0) target = $region90
              $region89: #{tpu_custom_call.1} parent=67 // pred_region
                %s975 = sshrl.u32 %s885, 4
                // While loop
                $region91: #{tpu_custom_call.1} parent=89 // loop_pre_header
                  _
                $region92: #{tpu_custom_call.1} parent=89 // loop_header
                  %s977 = sphi 0, %s979
                  %p978 = scmp.ge.s32.totalorder %s977, %s975
                  %s982 = sphi 0, %s1019
                  %s983 = sphi %s878, %s1022
                  %s984 = sphi %s889, %s1023
                $region93: #{tpu_custom_call.1} parent=89 // loop_header_branch
                  %981 = sbr.rel (%p978) target = $region97
                $region94: #{tpu_custom_call.1} parent=89 // loop_body
                  %v985 = vld [vmem:[%s983] sm:$0xff]
                  %986 = vst [vmem:[%s984] sm:$0xff] %v985
                  %v987 = vld [vmem:[%s983 + $0x8] sm:$0xff]
                  %988 = vst [vmem:[%s984 + $0x8] sm:$0xff] %v987
                  %v989 = vld [vmem:[%s983 + $0x10] sm:$0xff]
                  %990 = vst [vmem:[%s984 + $0x10] sm:$0xff] %v989
                  %v991 = vld [vmem:[%s983 + $0x18] sm:$0xff]
                  %992 = vst [vmem:[%s984 + $0x18] sm:$0xff] %v991
                  %v993 = vld [vmem:[%s983 + $0x20] sm:$0xff]
                  %994 = vst [vmem:[%s984 + $0x20] sm:$0xff] %v993
                  %v995 = vld [vmem:[%s983 + $0x28] sm:$0xff]
                  %996 = vst [vmem:[%s984 + $0x28] sm:$0xff] %v995
                  %v997 = vld [vmem:[%s983 + $0x30] sm:$0xff]
                  %998 = vst [vmem:[%s984 + $0x30] sm:$0xff] %v997
                  %v999 = vld [vmem:[%s983 + $0x38] sm:$0xff]
                  %1000 = vst [vmem:[%s984 + $0x38] sm:$0xff] %v999
                  %v1001 = vld [vmem:[%s983 + $0x40] sm:$0xff]
                  %1002 = vst [vmem:[%s984 + $0x40] sm:$0xff] %v1001
                  %v1003 = vld [vmem:[%s983 + $0x48] sm:$0xff]
                  %1004 = vst [vmem:[%s984 + $0x48] sm:$0xff] %v1003
                  %v1005 = vld [vmem:[%s983 + $0x50] sm:$0xff]
                  %1006 = vst [vmem:[%s984 + $0x50] sm:$0xff] %v1005
                  %v1007 = vld [vmem:[%s983 + $0x58] sm:$0xff]
                  %1008 = vst [vmem:[%s984 + $0x58] sm:$0xff] %v1007
                  %v1009 = vld [vmem:[%s983 + $0x60] sm:$0xff]
                  %1010 = vst [vmem:[%s984 + $0x60] sm:$0xff] %v1009
                  %v1011 = vld [vmem:[%s983 + $0x68] sm:$0xff]
                  %1012 = vst [vmem:[%s984 + $0x68] sm:$0xff] %v1011
                  %v1013 = vld [vmem:[%s983 + $0x70] sm:$0xff]
                  %1014 = vst [vmem:[%s984 + $0x70] sm:$0xff] %v1013
                  %v1015 = vld [vmem:[%s983 + $0x78] sm:$0xff]
                  %1016 = vst [vmem:[%s984 + $0x78] sm:$0xff] %v1015
                  %s1017 = sadd.s32 1, %s982
                  %p1018 = scmp.ge.s32.totalorder %s1017, %s975
                  %s1019 = scalar_select %p1018, 0, %s1017
                  %s1020 = smul.u32 %s1019, 128
                  %s1021 = smul.u32 %s1019, 128
                  %s1022 = scalar_lea.vmem %s878, %s1020 [#allocation3]
                  %s1023 = scalar_lea.vmem %s889, %s1021
                $region95: #{tpu_custom_call.1} parent=89 // loop_footer
                  %s979 = sadd.s32 %s977, 1
                $region96: #{tpu_custom_call.1} parent=89 // loop_footer_branch
                  %976 = sbr.rel target = $region92
                $region97: #{tpu_custom_call.1} parent=89 // loop_exit
                  _
                %s1024 = sshrl.u32 %s885, 4
                %s1025 = sand.u32 %s885, 15
                %s1026 = smul.u32 %s1024, 16
                %s1027 = smul.u32 8, %s1026
                %s1028 = scalar_lea.vmem %s878, %s1027 [#allocation3]
                %s1029 = smul.u32 8, %s1026
                %s1030 = scalar_lea.vmem %s889, %s1029
                // While loop
                $region98: #{tpu_custom_call.1} parent=89 // loop_pre_header
                  _
                $region99: #{tpu_custom_call.1} parent=89 // loop_header
                  %s1032 = sphi 0, %s1034
                  %p1033 = scmp.ge.s32.totalorder %s1032, %s1025
                  %s1037 = sphi 0, %s1044
                  %s1038 = sphi %s1028, %s1047
                  %s1039 = sphi %s1030, %s1048
                $region100: #{tpu_custom_call.1} parent=89 // loop_header_branch
                  %1036 = sbr.rel (%p1033) target = $region104
                $region101: #{tpu_custom_call.1} parent=89 // loop_body
                  %v1040 = vld [vmem:[%s1038] sm:$0xff]
                  %1041 = vst [vmem:[%s1039] sm:$0xff] %v1040
                  %s1042 = sadd.s32 1, %s1037
                  %p1043 = scmp.ge.s32.totalorder %s1042, %s1025
                  %s1044 = scalar_select %p1043, 0, %s1042
                  %s1045 = smul.u32 %s1044, 8
                  %s1046 = smul.u32 %s1044, 8
                  %s1047 = scalar_lea.vmem %s1028, %s1045 [#allocation3]
                  %s1048 = scalar_lea.vmem %s1030, %s1046
                $region102: #{tpu_custom_call.1} parent=89 // loop_footer
                  %s1034 = sadd.s32 %s1032, 1
                $region103: #{tpu_custom_call.1} parent=89 // loop_footer_branch
                  %1031 = sbr.rel target = $region99
                $region104: #{tpu_custom_call.1} parent=89 // loop_exit
                  _
              $region90: #{tpu_custom_call.1} parent=67 // pred_fallthru
                _
              // Predicated region
              $region105: #{tpu_custom_call.1} parent=67 // pred_check
                _
              $region106: #{tpu_custom_call.1} parent=67 // pred_check_branch
                %1050 = sbr.rel target = $region108
              $region107: #{tpu_custom_call.1} parent=67 // pred_region
                _
              $region108: #{tpu_custom_call.1} parent=67 // pred_fallthru
                _
            $region68: #{tpu_custom_call.1} parent=63 // pred_fallthru
              _
            // Predicated region
            $region69: #{tpu_custom_call.1} parent=63 // pred_check
              _
            $region70: #{tpu_custom_call.1} parent=63 // pred_check_branch
              %896 = sbr.rel target = $region72
            $region71: #{tpu_custom_call.1} parent=63 // pred_region
              %s898 = ssub.s32 256, 1
              %s899 = sshrl.u32 %s885, 4
              // While loop
              $region73: #{tpu_custom_call.1} parent=71 // loop_pre_header
                _
              $region74: #{tpu_custom_call.1} parent=71 // loop_header
                %s901 = sphi 0, %s903
                %p902 = scmp.ge.s32.totalorder %s901, %s899
                %s906 = sphi 0, %s943
                %s907 = sphi %s878, %s946
                %s908 = sphi %s889, %s947
              $region75: #{tpu_custom_call.1} parent=71 // loop_header_branch
                %905 = sbr.rel (%p902) target = $region79
              $region76: #{tpu_custom_call.1} parent=71 // loop_body
                %v909 = vld [vmem:[%s907] sm:%s898]
                %910 = vst [vmem:[%s908] sm:%s898] %v909
                %v911 = vld [vmem:[%s907 + $0x8] sm:%s898]
                %912 = vst [vmem:[%s908 + $0x8] sm:%s898] %v911
                %v913 = vld [vmem:[%s907 + $0x10] sm:%s898]
                %914 = vst [vmem:[%s908 + $0x10] sm:%s898] %v913
                %v915 = vld [vmem:[%s907 + $0x18] sm:%s898]
                %916 = vst [vmem:[%s908 + $0x18] sm:%s898] %v915
                %v917 = vld [vmem:[%s907 + $0x20] sm:%s898]
                %918 = vst [vmem:[%s908 + $0x20] sm:%s898] %v917
                %v919 = vld [vmem:[%s907 + $0x28] sm:%s898]
                %920 = vst [vmem:[%s908 + $0x28] sm:%s898] %v919
                %v921 = vld [vmem:[%s907 + $0x30] sm:%s898]
                %922 = vst [vmem:[%s908 + $0x30] sm:%s898] %v921
                %v923 = vld [vmem:[%s907 + $0x38] sm:%s898]
                %924 = vst [vmem:[%s908 + $0x38] sm:%s898] %v923
                %v925 = vld [vmem:[%s907 + $0x40] sm:%s898]
                %926 = vst [vmem:[%s908 + $0x40] sm:%s898] %v925
                %v927 = vld [vmem:[%s907 + $0x48] sm:%s898]
                %928 = vst [vmem:[%s908 + $0x48] sm:%s898] %v927
                %v929 = vld [vmem:[%s907 + $0x50] sm:%s898]
                %930 = vst [vmem:[%s908 + $0x50] sm:%s898] %v929
                %v931 = vld [vmem:[%s907 + $0x58] sm:%s898]
                %932 = vst [vmem:[%s908 + $0x58] sm:%s898] %v931
                %v933 = vld [vmem:[%s907 + $0x60] sm:%s898]
                %934 = vst [vmem:[%s908 + $0x60] sm:%s898] %v933
                %v935 = vld [vmem:[%s907 + $0x68] sm:%s898]
                %936 = vst [vmem:[%s908 + $0x68] sm:%s898] %v935
                %v937 = vld [vmem:[%s907 + $0x70] sm:%s898]
                %938 = vst [vmem:[%s908 + $0x70] sm:%s898] %v937
                %v939 = vld [vmem:[%s907 + $0x78] sm:%s898]
                %940 = vst [vmem:[%s908 + $0x78] sm:%s898] %v939
                %s941 = sadd.s32 1, %s906
                %p942 = scmp.ge.s32.totalorder %s941, %s899
                %s943 = scalar_select %p942, 0, %s941
                %s944 = smul.u32 %s943, 128
                %s945 = smul.u32 %s943, 128
                %s946 = scalar_lea.vmem %s878, %s944 [#allocation3]
                %s947 = scalar_lea.vmem %s889, %s945
              $region77: #{tpu_custom_call.1} parent=71 // loop_footer
                %s903 = sadd.s32 %s901, 1
              $region78: #{tpu_custom_call.1} parent=71 // loop_footer_branch
                %900 = sbr.rel target = $region74
              $region79: #{tpu_custom_call.1} parent=71 // loop_exit
                _
              %s948 = sshrl.u32 %s885, 4
              %s949 = sand.u32 %s885, 15
              %s950 = smul.u32 %s948, 16
              %s951 = smul.u32 8, %s950
              %s952 = scalar_lea.vmem %s878, %s951 [#allocation3]
              %s953 = smul.u32 8, %s950
              %s954 = scalar_lea.vmem %s889, %s953
              // While loop
              $region80: #{tpu_custom_call.1} parent=71 // loop_pre_header
                _
              $region81: #{tpu_custom_call.1} parent=71 // loop_header
                %s956 = sphi 0, %s958
                %p957 = scmp.ge.s32.totalorder %s956, %s949
                %s961 = sphi 0, %s968
                %s962 = sphi %s952, %s971
                %s963 = sphi %s954, %s972
              $region82: #{tpu_custom_call.1} parent=71 // loop_header_branch
                %960 = sbr.rel (%p957) target = $region86
              $region83: #{tpu_custom_call.1} parent=71 // loop_body
                %v964 = vld [vmem:[%s962] sm:%s898]
                %965 = vst [vmem:[%s963] sm:%s898] %v964
                %s966 = sadd.s32 1, %s961
                %p967 = scmp.ge.s32.totalorder %s966, %s949
                %s968 = scalar_select %p967, 0, %s966
                %s969 = smul.u32 %s968, 8
                %s970 = smul.u32 %s968, 8
                %s971 = scalar_lea.vmem %s952, %s969 [#allocation3]
                %s972 = scalar_lea.vmem %s954, %s970
              $region84: #{tpu_custom_call.1} parent=71 // loop_footer
                %s958 = sadd.s32 %s956, 1
              $region85: #{tpu_custom_call.1} parent=71 // loop_footer_branch
                %955 = sbr.rel target = $region81
              $region86: #{tpu_custom_call.1} parent=71 // loop_exit
                _
            $region72: #{tpu_custom_call.1} parent=63 // pred_fallthru
              _
          $region64: #{tpu_custom_call.1} parent=59 // pred_fallthru
            _
          %1051 = vnop
        $region60: #{tpu_custom_call.1} parent=55 // pred_fallthru
          _
      $region56: #{tpu_custom_call.1} parent=5 // pred_fallthru
        _
      %p1052 = scmp.le.s32.totalorder 2, %s17
      // Predicated region
      $region109: #{tpu_custom_call.1} parent=5 // pred_check
        %p1053 = pneg %p1052
      $region110: #{tpu_custom_call.1} parent=5 // pred_check_branch
        %1055 = sbr.rel (%p1053) target = $region112
      $region111: #{tpu_custom_call.1} parent=5 // pred_region
        %s1056 = ssub.s32 %s17, 2
        // Predicated region
        $region113: #{tpu_custom_call.1} parent=111 // pred_check
          %p1057 = pneg %p245
        $region114: #{tpu_custom_call.1} parent=111 // pred_check_branch
          %1059 = sbr.rel (%p1057) target = $region116
        $region115: #{tpu_custom_call.1} parent=111 // pred_region
          %s1060 = sand.u32 %s230, 1
          %s1061 = sand.u32 %s230, 1
          %s1062 = smul.addr %s1061, 128
          %s1063 = scalar_lea.vmem [#allocation3], %s1062
        $region116: #{tpu_custom_call.1} parent=111 // pred_fallthru
          _
      $region112: #{tpu_custom_call.1} parent=5 // pred_fallthru
        _
    $region6: #{tpu_custom_call.1} parent=1 // loop_footer
      %s21 = sadd.s32 1, %s17
    $region7: #{tpu_custom_call.1} parent=1 // loop_footer_branch
      %16 = sbr.rel target = $region3
    $region8: #{tpu_custom_call.1} parent=1 // loop_exit
      _

</llo_original>
